<compile_context>
chip_gen: v5e
topology: v5e:2x2
jax: 0.10.0
libtpu: 0.0.40
codegen_flags: <defaults>
</compile_context>

<pallas_src>
import functools
import math

import jax
import jax.numpy as jnp
from jax import lax
from jax.experimental import pallas as pl
from jax.experimental.pallas import tpu as pltpu


def _gat_kernel(feat_ref, adj_ref, w_ref, a1t_ref, a2_ref, out_ref, *, alpha, use_elu):
    """One graph per grid step.

    feat_ref : [1, N, Fin]  f32
    adj_ref  : [1, N, N]    int8 (nonzero => edge)
    w_ref    : [Fin, Fout]  f32
    a1t_ref  : [1, Fout]    f32 (a_1 transposed in the wrapper)
    a2_ref   : [Fout, 1]    f32
    out_ref  : [1, Fout, N] f32 (lane-dense; wrapper transposes back)
    """
    feat = feat_ref[0]                                                  # [N, Fin]
    W = w_ref[...]                                                      # [Fin, Fout]

    # h = feat @ W (reused for the attention logits AND the output projection).
    h = jnp.dot(feat, W, preferred_element_type=jnp.float32)            # [N, Fout]

    # logits[i, j] = (h @ a1)[j] + (h @ a2)[i]
    # Ax is produced directly as a lane-dense row [1, N] via a transposed-RHS dot.
    ax_row = lax.dot_general(a1t_ref[...], h, (((1,), (1,)), ((), ())),
                             preferred_element_type=jnp.float32)        # [1, N]
    ay_col = jnp.dot(h, a2_ref[...], preferred_element_type=jnp.float32)  # [N, 1]
    logits = ax_row + ay_col                                            # [N, N]

    # LeakyReLU (alpha is a compile-time Python float -> literal).
    e = jnp.where(logits > 0, logits, alpha * logits)

    # Adjacency mask (int8 in HBM/VMEM; widen once, single select in f32).
    adj = adj_ref[0].astype(jnp.float32)                                # [N, N]
    e = jnp.where(adj > 0, e, -9.0e15)

    # Row softmax; approx reciprocal goes to the EUP slot (off the VPU path).
    m = jnp.max(e, axis=-1, keepdims=True)
    p = jnp.exp(e - m)
    denom = jnp.sum(p, axis=-1, keepdims=True)
    attn = p * pl.reciprocal(denom, approx=True)                        # [N, N]
    # TODO(synk): attention dropout skipped (eval mode / training=False).

    # Reassociated update: (attn @ feat) @ W == attn @ (feat @ W) == attn @ h.
    out = jnp.dot(attn, h, preferred_element_type=jnp.float32)          # [N, Fout]

    if use_elu:
        # min() keeps exp() finite in the unselected branch.
        out = jnp.where(out > 0, out, jnp.exp(jnp.minimum(out, 0.0)) - 1.0)

    # Lane-dense store: lanes = N (128) instead of Fout (32).
    out_ref[0] = out.T.astype(out_ref.dtype)                            # [Fout, N]


def order1_gat_forward(feat, adj, W, a1, a2, *, alpha=0.2, use_elu=True):
    B, N, Fin = feat.shape
    Fout = W.shape[1]

    adj_i8 = (adj > 0).astype(jnp.int8)        # 4x smaller dominant HBM operand
    a1_t = jnp.transpose(a1)                   # [1, Fout]

    kernel = functools.partial(_gat_kernel, alpha=float(alpha), use_elu=bool(use_elu))
    out_t = pl.pallas_call(
        kernel,
        out_shape=jax.ShapeDtypeStruct((B, Fout, N), jnp.float32),
        grid_spec=pltpu.PrefetchScalarGridSpec(
            num_scalar_prefetch=0,
            grid=(B,),
            in_specs=[
                pl.BlockSpec((1, N, Fin), lambda b: (b, 0, 0)),
                pl.BlockSpec((1, N, N), lambda b: (b, 0, 0)),
                pl.BlockSpec((Fin, Fout), lambda b: (0, 0)),
                pl.BlockSpec((1, Fout), lambda b: (0, 0)),
                pl.BlockSpec((Fout, 1), lambda b: (0, 0)),
            ],
            out_specs=pl.BlockSpec((1, Fout, N), lambda b: (b, 0, 0)),
        ),
        compiler_params=pltpu.CompilerParams(
            dimension_semantics=("parallel",),
        ),
    )(feat, adj_i8, W, a1_t, a2)

    return jnp.transpose(out_t, (0, 2, 1))     # back to [B, N, Fout]


def _xavier_uniform(key, shape, gain):
    fan_in, fan_out = shape[0], shape[1]
    bound = gain * math.sqrt(6.0 / (fan_in + fan_out))
    return jax.random.uniform(key, shape, jnp.float32, -bound, bound)


def _reference(feat, adj, W, a1, a2, alpha, use_elu):
    # Matches the PyTorch module math exactly: (attn @ feat) @ W, exact softmax.
    h = jnp.einsum("bnf,fo->bno", feat, W)
    Ax = jnp.einsum("bno,oi->bni", h, a1)          # [B, N, 1]
    Ay = jnp.einsum("bno,oi->bni", h, a2)          # [B, N, 1]
    logits = jnp.transpose(Ax, (0, 2, 1)) + Ay     # [B, N, N]
    e = jnp.where(logits > 0, logits, alpha * logits)
    e = jnp.where(adj > 0, e, -9.0e15)
    attn = jax.nn.softmax(e, axis=-1)
    feat_agg = jnp.einsum("bij,bjf->bif", attn, feat)
    out = jnp.einsum("bnf,fo->bno", feat_agg, W)
    if use_elu:
        out = jnp.where(out > 0, out, jnp.exp(out) - 1.0)
    return out


if __name__ == "__main__":
    B, N, Fin, Fout = 2, 128, 32, 32
    alpha = 0.2
    gain = 1.414

    root = jax.random.PRNGKey(0)
    k_feat, k_adj, k_w, k_a1, k_a2 = jax.random.split(root, 5)

    feat = jax.random.normal(k_feat, (B, N, Fin), jnp.float32)
    # Dense-ish random adjacency with self-loops so every row has a neighbor.
    adj = (jax.random.uniform(k_adj, (B, N, N)) < 0.3).astype(jnp.float32)
    adj = jnp.maximum(adj, jnp.eye(N, dtype=jnp.float32)[None])

    W = _xavier_uniform(k_w, (Fin, Fout), gain)
    a1 = _xavier_uniform(k_a1, (Fout, 1), gain)
    a2 = _xavier_uniform(k_a2, (Fout, 1), gain)

    out = order1_gat_forward(feat, adj, W, a1, a2, alpha=alpha, use_elu=True)
    out = jax.block_until_ready(out)

    ref = _reference(feat, adj, W, a1, a2, alpha, True)
    assert out.shape == (B, N, Fout)
    # Tolerance covers the approx reciprocal and the matmul reassociation.
    assert jnp.allclose(out, ref, atol=5e-3, rtol=5e-3), "mismatch vs JAX reference"

    print("KERNEL_OK")
</pallas_src>

<mosaic_0001>
module attributes {stable_mosaic.version = 11 : i64} {
  func.func @_gat_kernel(%arg0: i32, %arg1: memref<1x128x32xf32, #tpu.memory_space<vmem>>, %arg2: memref<1x128x128xi8, #tpu.memory_space<vmem>>, %arg3: memref<32x32xf32, #tpu.memory_space<vmem>>, %arg4: memref<1x32xf32, #tpu.memory_space<vmem>>, %arg5: memref<32x1xf32, #tpu.memory_space<vmem>>, %arg6: memref<1x32x128xf32, #tpu.memory_space<vmem>>) attributes {dimension_semantics = [#tpu.dimension_semantics<parallel>], iteration_bounds = array<i64: 2>, scalar_prefetch = 0 : i64, scratch_operands = 0 : i64, tpu.core_type = #tpu.core_type<tc>, window_params = [{transform_indices = @transform_0, window_bounds = array<i64: 1, 128, 32>}, {transform_indices = @transform_1, window_bounds = array<i64: 1, 128, 128>}, {pipeline_mode = #tpu.pipeline_mode<synchronous>, transform_indices = @transform_2, window_bounds = array<i64: 32, 32>}, {pipeline_mode = #tpu.pipeline_mode<synchronous>, transform_indices = @transform_3, window_bounds = array<i64: 1, 32>}, {pipeline_mode = #tpu.pipeline_mode<synchronous>, transform_indices = @transform_4, window_bounds = array<i64: 32, 1>}, {transform_indices = @transform_5, window_bounds = array<i64: 1, 32, 128>}]} {
    %c0 = arith.constant 0 : index
    %c0_0 = arith.constant 0 : index
    %c0_1 = arith.constant 0 : index
    %0 = vector.load %arg1[%c0, %c0_0, %c0_1] : memref<1x128x32xf32, #tpu.memory_space<vmem>>, vector<1x128x32xf32>
    %1 = vector.shape_cast %0 : vector<1x128x32xf32> to vector<128x32xf32>
    %c0_2 = arith.constant 0 : index
    %c0_3 = arith.constant 0 : index
    %2 = vector.load %arg3[%c0_2, %c0_3] : memref<32x32xf32, #tpu.memory_space<vmem>>, vector<32x32xf32>
    %cst = arith.constant dense<0.000000e+00> : vector<128x32xf32>
    %3 = tpu.matmul %1, %2, %cst {dimension_numbers = #tpu.dot_dimension_numbers<[1], [0], [0], [1], [0, 0, 1, 1], [], []>} : vector<128x32xf32>, vector<32x32xf32>, vector<128x32xf32> -> vector<128x32xf32>
    %c0_4 = arith.constant 0 : index
    %c0_5 = arith.constant 0 : index
    %4 = vector.load %arg4[%c0_4, %c0_5] : memref<1x32xf32, #tpu.memory_space<vmem>>, vector<1x32xf32>
    %cst_6 = arith.constant dense<0.000000e+00> : vector<1x128xf32>
    %5 = tpu.matmul %4, %3, %cst_6 {dimension_numbers = #tpu.dot_dimension_numbers<[1], [1], [0], [0], [0, 0, 1, 0], [], []>} : vector<1x32xf32>, vector<128x32xf32>, vector<1x128xf32> -> vector<1x128xf32>
    %c0_7 = arith.constant 0 : index
    %c0_8 = arith.constant 0 : index
    %6 = vector.load %arg5[%c0_7, %c0_8] : memref<32x1xf32, #tpu.memory_space<vmem>>, vector<32x1xf32>
    %cst_9 = arith.constant dense<0.000000e+00> : vector<128x1xf32>
    %7 = tpu.matmul %3, %6, %cst_9 {dimension_numbers = #tpu.dot_dimension_numbers<[1], [0], [0], [1], [0, 0, 1, 1], [], []>} : vector<128x32xf32>, vector<32x1xf32>, vector<128x1xf32> -> vector<128x1xf32>
    %8 = vector.broadcast %5 : vector<1x128xf32> to vector<128x128xf32>
    %9 = vector.broadcast %7 : vector<128x1xf32> to vector<128x128xf32>
    %10 = arith.addf %8, %9 : vector<128x128xf32>
    %cst_10 = arith.constant 0.000000e+00 : f32
    %11 = vector.broadcast %cst_10 : f32 to vector<128x128xf32>
    %12 = arith.cmpf ogt, %10, %11 : vector<128x128xf32>
    %cst_11 = arith.constant 2.000000e-01 : f32
    %13 = vector.broadcast %cst_11 : f32 to vector<128x128xf32>
    %14 = arith.mulf %13, %10 : vector<128x128xf32>
    %15 = arith.select %12, %10, %14 : vector<128x128xi1>, vector<128x128xf32>
    %c0_12 = arith.constant 0 : index
    %c0_13 = arith.constant 0 : index
    %c0_14 = arith.constant 0 : index
    %16 = vector.load %arg2[%c0_12, %c0_13, %c0_14] : memref<1x128x128xi8, #tpu.memory_space<vmem>>, vector<1x128x128xi8>
    %17 = vector.shape_cast %16 : vector<1x128x128xi8> to vector<128x128xi8>
    %18 = arith.sitofp %17 : vector<128x128xi8> to vector<128x128xf32>
    %cst_15 = arith.constant 0.000000e+00 : f32
    %19 = vector.broadcast %cst_15 : f32 to vector<128x128xf32>
    %20 = arith.cmpf ogt, %18, %19 : vector<128x128xf32>
    %cst_16 = arith.constant -9.000000e+15 : f32
    %21 = vector.broadcast %cst_16 : f32 to vector<128x128xf32>
    %22 = arith.select %20, %15, %21 : vector<128x128xi1>, vector<128x128xf32>
    %cst_17 = arith.constant dense<0xFF800000> : vector<128xf32>
    %23 = vector.multi_reduction <maximumf>, %22, %cst_17 [1] : vector<128x128xf32> to vector<128xf32>
    %24 = vector.shape_cast %23 : vector<128xf32> to vector<128x1xf32>
    %25 = vector.broadcast %24 : vector<128x1xf32> to vector<128x128xf32>
    %26 = arith.subf %22, %25 : vector<128x128xf32>
    %27 = math.exp %26 : vector<128x128xf32>
    %cst_18 = arith.constant dense<0.000000e+00> : vector<128xf32>
    %28 = vector.multi_reduction <add>, %27, %cst_18 [1] : vector<128x128xf32> to vector<128xf32>
    %29 = vector.shape_cast %28 : vector<128xf32> to vector<128x1xf32>
    %30 = tpu.reciprocal %29 {approx = true} : vector<128x1xf32> -> vector<128x1xf32>
    %31 = vector.broadcast %30 : vector<128x1xf32> to vector<128x128xf32>
    %32 = arith.mulf %27, %31 : vector<128x128xf32>
    %cst_19 = arith.constant dense<0.000000e+00> : vector<128x32xf32>
    %33 = tpu.matmul %32, %3, %cst_19 {dimension_numbers = #tpu.dot_dimension_numbers<[1], [0], [0], [1], [0, 0, 1, 1], [], []>} : vector<128x128xf32>, vector<128x32xf32>, vector<128x32xf32> -> vector<128x32xf32>
    %cst_20 = arith.constant 0.000000e+00 : f32
    %34 = vector.broadcast %cst_20 : f32 to vector<128x32xf32>
    %35 = arith.cmpf ogt, %33, %34 : vector<128x32xf32>
    %cst_21 = arith.constant 0.000000e+00 : f32
    %36 = vector.broadcast %cst_21 : f32 to vector<128x32xf32>
    %37 = arith.minimumf %33, %36 : vector<128x32xf32>
    %38 = math.exp %37 : vector<128x32xf32>
    %cst_22 = arith.constant 1.000000e+00 : f32
    %39 = vector.broadcast %cst_22 : f32 to vector<128x32xf32>
    %40 = arith.subf %38, %39 : vector<128x32xf32>
    %41 = arith.select %35, %33, %40 : vector<128x32xi1>, vector<128x32xf32>
    %42 = tpu.transpose %41, [1, 0] : vector<128x32xf32> -> vector<32x128xf32>
    %c0_23 = arith.constant 0 : index
    %c0_24 = arith.constant 0 : index
    %c0_25 = arith.constant 0 : index
    %43 = vector.load %arg6[%c0_23, %c0_24, %c0_25] : memref<1x32x128xf32, #tpu.memory_space<vmem>>, vector<1x32x128xf32>
    %44 = vector.shape_cast %43 : vector<1x32x128xf32> to vector<32x128xf32>
    %45 = vector.shape_cast %42 : vector<32x128xf32> to vector<1x32x128xf32>
    tpu.vector_store %arg6[%c0_23, %c0_24, %c0_25], %45 {strides = array<i32>} : memref<1x32x128xf32, #tpu.memory_space<vmem>>, vector<1x32x128xf32>,
    return
  }
  func.func @transform_0(%arg0: i32) -> (i32, i32, i32) {
    %c0_i32 = arith.constant 0 : i32
    %c0_i32_0 = arith.constant 0 : i32
    %c0_i32_1 = arith.constant 0 : i32
    return %arg0, %c0_i32, %c0_i32_0 : i32, i32, i32
  }
  func.func @transform_1(%arg0: i32) -> (i32, i32, i32) {
    %c0_i32 = arith.constant 0 : i32
    %c0_i32_0 = arith.constant 0 : i32
    %c0_i32_1 = arith.constant 0 : i32
    return %arg0, %c0_i32, %c0_i32_0 : i32, i32, i32
  }
  func.func @transform_2(%arg0: i32) -> (i32, i32) {
    %c0_i32 = arith.constant 0 : i32
    %c0_i32_0 = arith.constant 0 : i32
    %c0_i32_1 = arith.constant 0 : i32
    return %c0_i32, %c0_i32_0 : i32, i32
  }
  func.func @transform_3(%arg0: i32) -> (i32, i32) {
    %c0_i32 = arith.constant 0 : i32
    %c0_i32_0 = arith.constant 0 : i32
    %c0_i32_1 = arith.constant 0 : i32
    return %c0_i32, %c0_i32_0 : i32, i32
  }
  func.func @transform_4(%arg0: i32) -> (i32, i32) {
    %c0_i32 = arith.constant 0 : i32
    %c0_i32_0 = arith.constant 0 : i32
    %c0_i32_1 = arith.constant 0 : i32
    return %c0_i32, %c0_i32_0 : i32, i32
  }
  func.func @transform_5(%arg0: i32) -> (i32, i32, i32) {
    %c0_i32 = arith.constant 0 : i32
    %c0_i32_0 = arith.constant 0 : i32
    %c0_i32_1 = arith.constant 0 : i32
    return %arg0, %c0_i32, %c0_i32_0 : i32, i32, i32
  }
}

</mosaic_0001>

<llo_original>
// kernel: tpu_custom_call.1
$region0: #{tpu_custom_call.1}
  #allocation0 [shape = 'u32[]', space=smem, size = 0x4, offset = 0x4, fixed_abs, tag = 'smem constant byte address 0x4 - core index']
  #allocation1 [shape = 'u32[72,128]{1,0:T(1,128)}', space=vmem, size = 0x9000, scoped, tag = 'internal scratch']
  %s0 = inlined_call_operand.vmem [shape: f32[2,128,32], index: 0, kind: input, shape index: {}]
  %s1 = inlined_call_operand.vmem [shape: s8[2,128,128], index: 1, kind: input, shape index: {}]
  %s2 = inlined_call_operand.vmem [shape: f32[32,32], index: 2, kind: input, shape index: {}]
  %s3 = inlined_call_operand.vmem [shape: f32[1,32], index: 3, kind: input, shape index: {}]
  %s4 = inlined_call_operand.vmem [shape: f32[32,1], index: 4, kind: input, shape index: {}]
  %s5 = inlined_call_operand.hbm [shape: f32[2,32,128], index: 5, kind: output, shape index: {}]
  %s6 = sld [smem:[#allocation0]]
  $region53: #{tpu_custom_call.1} parent=0
    _
  %s8 = ssub.s32 1, %s6
  %s9 = scalar_select 0, %s8, %s6
  $region1: #{tpu_custom_call.1} parent=0
    #allocation2 [shape = 'u8[32768]{0}', space=vmem, size = 0x8000, scoped, tag = 'output window, operand 0']
    #allocation3 [shape = 's32[2]{0}', space=sflag, size = 0x8, scoped, tag = 'scoped memory for tpu_custom_call.1']
    %10 = vsyncpa [#allocation3], 0
    %s11 = scalar_lea.sflag [#allocation3], 1
    %12 = vsyncpa %s11, 0
    loop: start=0, step=1, limit=4
    $region2: #{tpu_custom_call.1} parent=1 // loop_pre_header
      _
    $region3: #{tpu_custom_call.1} parent=1 // loop_header
      %s14 = sphi 0, %s18
      %p15 = scmp.ge.s32.totalorder %s14, 4
      %s24 = sphi 0, %s26
      %s27 = sphi 0, %s24
      %s28 = sphi 0, %s27
      %s44 = sphi 0, %s28
      %s50 = sphi 0, %s52
      %s53 = sphi 0, %s50
      %s54 = sphi 0, %s53
      %s70 = sphi 0, %s54
      %s74 = sphi 0, %s74
      %s76 = sphi 0, %s74
      %s77 = sphi 0, %s76
      %s91 = sphi 0, %s77
      %s95 = sphi 0, %s95
      %s97 = sphi 0, %s95
      %s98 = sphi 0, %s97
      %s112 = sphi 0, %s98
      %s116 = sphi 0, %s116
      %s118 = sphi 0, %s116
      %s119 = sphi 0, %s118
      %s133 = sphi 0, %s119
      %s139 = sphi 0, %s141
      %s142 = sphi 0, %s139
      %s143 = sphi 0, %s142
      %s159 = sphi 0, %s143
    $region4: #{tpu_custom_call.1} parent=1 // loop_header_branch
      %17 = sbr.rel (%p15) target = $region8
    $region5: #{tpu_custom_call.1} parent=1 // loop_body
      %s19 = ssub.s32 %s14, 1
      %s20 = ssub.s32 %s14, 2
      %s21 = sadd.s32 %s14, 1
      %s22 = ssub.s32 %s14, %s21
      %p23 = scmp.eq.s32.totalorder %s22, 0
      %s25 = sadd.s32 %s24, 1
      %s26 = scalar_select %p23, %s24, %s25
      %p29 = pneg %p23
      %p30 = scmp.eq.s32.totalorder %s14, 1
      %p31 = por %p29, %p30
      %p32 = scmp.ne.s32.totalorder %s24, %s27
      %p33 = scmp.eq.s32.totalorder %s14, 0
      %p34 = por %p32, %p33
      %p35 = scmp.ne.s32.totalorder %s24, %s27
      %p36 = scmp.eq.s32.totalorder %s19, 1
      %p37 = por %p35, %p36
      %p38 = scmp.ne.s32.totalorder %s27, %s28
      %p39 = scmp.eq.s32.totalorder %s19, 0
      %p40 = por %p38, %p39
      %p41 = scmp.ne.s32.totalorder %s27, %s28
      %p42 = scmp.eq.s32.totalorder %s20, 1
      %p43 = por %p41, %p42
      %p45 = scmp.ne.s32.totalorder %s28, %s44
      %p46 = scmp.eq.s32.totalorder %s20, 0
      %p47 = por %p45, %p46
      %s48 = ssub.s32 %s14, %s21
      %p49 = scmp.eq.s32.totalorder %s48, 0
      %s51 = sadd.s32 %s50, 1
      %s52 = scalar_select %p49, %s50, %s51
      %p55 = pneg %p49
      %p56 = scmp.eq.s32.totalorder %s14, 1
      %p57 = por %p55, %p56
      %p58 = scmp.ne.s32.totalorder %s50, %s53
      %p59 = scmp.eq.s32.totalorder %s14, 0
      %p60 = por %p58, %p59
      %p61 = scmp.ne.s32.totalorder %s50, %s53
      %p62 = scmp.eq.s32.totalorder %s19, 1
      %p63 = por %p61, %p62
      %p64 = scmp.ne.s32.totalorder %s53, %s54
      %p65 = scmp.eq.s32.totalorder %s19, 0
      %p66 = por %p64, %p65
      %p67 = scmp.ne.s32.totalorder %s53, %s54
      %p68 = scmp.eq.s32.totalorder %s20, 1
      %p69 = por %p67, %p68
      %p71 = scmp.ne.s32.totalorder %s54, %s70
      %p72 = scmp.eq.s32.totalorder %s20, 0
      %p73 = por %p71, %p72
      %s75 = sadd.s32 %s74, 1
      %p78 = scmp.eq.s32.totalorder %s14, 1
      %p79 = scmp.ne.s32.totalorder %s74, %s76
      %p80 = scmp.eq.s32.totalorder %s14, 0
      %p81 = por %p79, %p80
      %p82 = scmp.ne.s32.totalorder %s74, %s76
      %p83 = scmp.eq.s32.totalorder %s19, 1
      %p84 = por %p82, %p83
      %p85 = scmp.ne.s32.totalorder %s76, %s77
      %p86 = scmp.eq.s32.totalorder %s19, 0
      %p87 = por %p85, %p86
      %p88 = scmp.ne.s32.totalorder %s76, %s77
      %p89 = scmp.eq.s32.totalorder %s20, 1
      %p90 = por %p88, %p89
      %p92 = scmp.ne.s32.totalorder %s77, %s91
      %p93 = scmp.eq.s32.totalorder %s20, 0
      %p94 = por %p92, %p93
      %s96 = sadd.s32 %s95, 1
      %p99 = scmp.eq.s32.totalorder %s14, 1
      %p100 = scmp.ne.s32.totalorder %s95, %s97
      %p101 = scmp.eq.s32.totalorder %s14, 0
      %p102 = por %p100, %p101
      %p103 = scmp.ne.s32.totalorder %s95, %s97
      %p104 = scmp.eq.s32.totalorder %s19, 1
      %p105 = por %p103, %p104
      %p106 = scmp.ne.s32.totalorder %s97, %s98
      %p107 = scmp.eq.s32.totalorder %s19, 0
      %p108 = por %p106, %p107
      %p109 = scmp.ne.s32.totalorder %s97, %s98
      %p110 = scmp.eq.s32.totalorder %s20, 1
      %p111 = por %p109, %p110
      %p113 = scmp.ne.s32.totalorder %s98, %s112
      %p114 = scmp.eq.s32.totalorder %s20, 0
      %p115 = por %p113, %p114
      %s117 = sadd.s32 %s116, 1
      %p120 = scmp.eq.s32.totalorder %s14, 1
      %p121 = scmp.ne.s32.totalorder %s116, %s118
      %p122 = scmp.eq.s32.totalorder %s14, 0
      %p123 = por %p121, %p122
      %p124 = scmp.ne.s32.totalorder %s116, %s118
      %p125 = scmp.eq.s32.totalorder %s19, 1
      %p126 = por %p124, %p125
      %p127 = scmp.ne.s32.totalorder %s118, %s119
      %p128 = scmp.eq.s32.totalorder %s19, 0
      %p129 = por %p127, %p128
      %p130 = scmp.ne.s32.totalorder %s118, %s119
      %p131 = scmp.eq.s32.totalorder %s20, 1
      %p132 = por %p130, %p131
      %p134 = scmp.ne.s32.totalorder %s119, %s133
      %p135 = scmp.eq.s32.totalorder %s20, 0
      %p136 = por %p134, %p135
      %s137 = ssub.s32 %s14, %s21
      %p138 = scmp.eq.s32.totalorder %s137, 0
      %s140 = sadd.s32 %s139, 1
      %s141 = scalar_select %p138, %s139, %s140
      %p144 = pneg %p138
      %p145 = scmp.eq.s32.totalorder %s14, 1
      %p146 = por %p144, %p145
      %p147 = scmp.ne.s32.totalorder %s139, %s142
      %p148 = scmp.eq.s32.totalorder %s14, 0
      %p149 = por %p147, %p148
      %p150 = scmp.ne.s32.totalorder %s139, %s142
      %p151 = scmp.eq.s32.totalorder %s19, 1
      %p152 = por %p150, %p151
      %p153 = scmp.ne.s32.totalorder %s142, %s143
      %p154 = scmp.eq.s32.totalorder %s19, 0
      %p155 = por %p153, %p154
      %p156 = scmp.ne.s32.totalorder %s142, %s143
      %p157 = scmp.eq.s32.totalorder %s20, 1
      %p158 = por %p156, %p157
      %p160 = scmp.ne.s32.totalorder %s143, %s159
      %p161 = scmp.eq.s32.totalorder %s20, 0
      %p162 = por %p160, %p161
      %p163 = scmp.le.s32.totalorder 1, %s14
      %p164 = scmp.lt.s32.totalorder %s14, 3
      %p165 = pnand %p163, %p164
      %p166 = pneg %p165
      // Predicated region
      $region9: #{tpu_custom_call.1} parent=5 // pred_check
        _
      $region10: #{tpu_custom_call.1} parent=5 // pred_check_branch
        %168 = sbr.rel (%p165) target = $region12
      $region11: #{tpu_custom_call.1} parent=5 // pred_region
        %s169 = ssub.s32 %s14, 1
        // Predicated region
        $region13: #{tpu_custom_call.1} parent=11 // pred_check
          %p170 = pneg %p87
        $region14: #{tpu_custom_call.1} parent=11 // pred_check_branch
          %172 = sbr.rel (%p170) target = $region16
        $region15: #{tpu_custom_call.1} parent=11 // pred_region
          _
        $region16: #{tpu_custom_call.1} parent=11 // pred_fallthru
          _
        // Predicated region
        $region17: #{tpu_custom_call.1} parent=11 // pred_check
          %p173 = pneg %p108
        $region18: #{tpu_custom_call.1} parent=11 // pred_check_branch
          %175 = sbr.rel (%p173) target = $region20
        $region19: #{tpu_custom_call.1} parent=11 // pred_region
          _
        $region20: #{tpu_custom_call.1} parent=11 // pred_fallthru
          _
        // Predicated region
        $region21: #{tpu_custom_call.1} parent=11 // pred_check
          %p176 = pneg %p129
        $region22: #{tpu_custom_call.1} parent=11 // pred_check_branch
          %178 = sbr.rel (%p176) target = $region24
        $region23: #{tpu_custom_call.1} parent=11 // pred_region
          _
        $region24: #{tpu_custom_call.1} parent=11 // pred_fallthru
          _
      $region12: #{tpu_custom_call.1} parent=5 // pred_fallthru
        _
      %p179 = scmp.lt.s32.totalorder %s14, 2
      // Predicated region
      $region25: #{tpu_custom_call.1} parent=5 // pred_check
        %p180 = pneg %p179
      $region26: #{tpu_custom_call.1} parent=5 // pred_check_branch
        %182 = sbr.rel (%p180) target = $region28
      $region27: #{tpu_custom_call.1} parent=5 // pred_region
        // Predicated region
        $region29: #{tpu_custom_call.1} parent=27 // pred_check
          %p183 = pneg %p34
        $region30: #{tpu_custom_call.1} parent=27 // pred_check_branch
          %185 = sbr.rel (%p183) target = $region32
        $region31: #{tpu_custom_call.1} parent=27 // pred_region
          %p186 = scmp.lt.s32.totalorder %s14, 1
          %s187 = scalar_select %p186, %s14, 1
          %s188 = smul.addr %s187, 16
          %s189 = smul.addr %s188, 8
          %s190 = scalar_lea.vmem %s0, %s189
        $region32: #{tpu_custom_call.1} parent=27 // pred_fallthru
          _
        // Predicated region
        $region33: #{tpu_custom_call.1} parent=27 // pred_check
          %p191 = pneg %p60
        $region34: #{tpu_custom_call.1} parent=27 // pred_check_branch
          %193 = sbr.rel (%p191) target = $region36
        $region35: #{tpu_custom_call.1} parent=27 // pred_region
          %p194 = scmp.lt.s32.totalorder %s14, 1
          %s195 = scalar_select %p194, %s14, 1
          %s196 = smul.addr %s195, 4
          %s197 = smul.addr %s196, 8
          %s198 = scalar_lea.vmem %s1, %s197
        $region36: #{tpu_custom_call.1} parent=27 // pred_fallthru
          _
      $region28: #{tpu_custom_call.1} parent=5 // pred_fallthru
        _
      %p199 = scmp.le.s32.totalorder 1, %s14
      %p200 = scmp.lt.s32.totalorder %s14, 3
      %p201 = pnand %p199, %p200
      %p202 = pneg %p201
      // Predicated region
      $region37: #{tpu_custom_call.1} parent=5 // pred_check
        _
      $region38: #{tpu_custom_call.1} parent=5 // pred_check_branch
        %204 = sbr.rel (%p201) target = $region40
      $region39: #{tpu_custom_call.1} parent=5 // pred_region
        %s205 = ssub.s32 %s14, 1
        %p206 = scmp.lt.s32.totalorder %s19, 1
        %s207 = scalar_select %p206, %s19, 1
        %s208 = smul.addr %s207, 16
        %s209 = smul.addr %s208, 8
        %s210 = scalar_lea.vmem %s0, %s209
        %p211 = pneg %p40
        %p212 = pneg %p37
        %p213 = scmp.lt.s32.totalorder %s19, 1
        %s214 = scalar_select %p213, %s19, 1
        %s215 = smul.addr %s214, 4
        %s216 = smul.addr %s215, 8
        %s217 = scalar_lea.vmem %s1, %s216
        %p218 = pneg %p66
        %p219 = pneg %p63
        %p220 = pneg %p87
        %p221 = pneg %p84
        %p222 = pneg %p108
        %p223 = pneg %p105
        %p224 = pneg %p129
        %p225 = pneg %p126
        %p226 = pneg %p155
        %p227 = pneg %p152
        %s228 = sand.u32 %s142, 1
        %s229 = scalar_lea.sflag [#allocation3], %s228
        %s230 = sand.u32 %s142, 1
        %s231 = smul.addr %s230, 32
        %s232 = scalar_lea.vmem [#allocation2], %s231
        %p233 = scmp.lt.s32.totalorder %s19, 1
        %s234 = scalar_select %p233, %s19, 1
        %s235 = smul.addr %s234, 16
        %s236 = smul.addr %s235, 8
        %s237 = scalar_lea.vmem %s0, %s236
        %p238 = scmp.lt.s32.totalorder %s19, 1
        %s239 = scalar_select %p238, %s19, 1
        %s240 = smul.addr %s239, 4
        %s241 = smul.addr %s240, 8
        %s242 = scalar_lea.vmem %s1, %s241
        %v243 = vld [vmem:[%s237] sm:$0xff]
        %v244 = vld [vmem:[%s237 + $0x8] sm:$0xff]
        %v245 = vld [vmem:[%s237 + $0x10] sm:$0xff]
        %v246 = vld [vmem:[%s237 + $0x18] sm:$0xff]
        %v247 = vld [vmem:[%s237 + $0x20] sm:$0xff]
        %v248 = vld [vmem:[%s237 + $0x28] sm:$0xff]
        %v249 = vld [vmem:[%s237 + $0x30] sm:$0xff]
        %v250 = vld [vmem:[%s237 + $0x38] sm:$0xff]
        %v251 = vld [vmem:[%s237 + $0x40] sm:$0xff]
        %v252 = vld [vmem:[%s237 + $0x48] sm:$0xff]
        %v253 = vld [vmem:[%s237 + $0x50] sm:$0xff]
        %v254 = vld [vmem:[%s237 + $0x58] sm:$0xff]
        %v255 = vld [vmem:[%s237 + $0x60] sm:$0xff]
        %v256 = vld [vmem:[%s237 + $0x68] sm:$0xff]
        %v257 = vld [vmem:[%s237 + $0x70] sm:$0xff]
        %v258 = vld [vmem:[%s237 + $0x78] sm:$0xff]
        %v259 = vld [vmem:[%s2] sm:$0xff]
        %v260 = vld [vmem:[%s2 + $0x8] sm:$0xff]
        %v261 = vld [vmem:[%s2 + $0x10] sm:$0xff]
        %v262 = vld [vmem:[%s2 + $0x18] sm:$0xff]
        %vm263 = vcmask 261120
        %v265 = vsel %vm263, %v243, 0
        %v268 = vsel %vm263, %v244, 0
        %v271 = vsel %vm263, %v245, 0
        %v274 = vsel %vm263, %v246, 0
        %v277 = vsel %vm263, %v247, 0
        %v280 = vsel %vm263, %v248, 0
        %v283 = vsel %vm263, %v249, 0
        %v286 = vsel %vm263, %v250, 0
        %v289 = vsel %vm263, %v251, 0
        %v292 = vsel %vm263, %v252, 0
        %v295 = vsel %vm263, %v253, 0
        %v298 = vsel %vm263, %v254, 0
        %v301 = vsel %vm263, %v255, 0
        %v304 = vsel %vm263, %v256, 0
        %v307 = vsel %vm263, %v257, 0
        %v310 = vsel %vm263, %v258, 0
        %312 = vmatpush.msra.mxu0 0.0
        %313 = vmatpush.msra.mxu0 0.0
        %314 = vmatpush.msra.mxu0 0.0
        %315 = vmatpush.msra.mxu0 0.0
        %316 = vmatpush.msra.mxu0 0.0
        %317 = vmatpush.msra.mxu0 0.0
        %318 = vmatpush.msra.mxu0 0.0
        %319 = vmatpush.msra.mxu0 0.0
        %320 = vmatpush.msra.mxu0 0.0
        %321 = vmatpush.msra.mxu0 0.0
        %322 = vmatpush.msra.mxu0 0.0
        %323 = vmatpush.msra.mxu0 0.0
        %324 = vmatpush.msra.mxu0 %v262
        %325 = vmatpush.msra.mxu0 %v261
        %326 = vmatpush.msra.mxu0 %v260
        %327 = vmatpush.msra.mxu0 %v259
        %328 = vmatmul.f32.gmra.mxu0 %v265
        %v329 = vpop.f32.mrf.mxu0
        %v330 = vadd.f32 0.0, %v329
        %331 = vmatmul.f32.gmra.mxu0 %v268
        %v332 = vpop.f32.mrf.mxu0
        %v333 = vadd.f32 0.0, %v332
        %334 = vmatmul.f32.gmra.mxu0 %v271
        %v335 = vpop.f32.mrf.mxu0
        %v336 = vadd.f32 0.0, %v335
        %337 = vmatmul.f32.gmra.mxu0 %v274
        %v338 = vpop.f32.mrf.mxu0
        %v339 = vadd.f32 0.0, %v338
        %340 = vmatmul.f32.gmra.mxu0 %v277
        %v341 = vpop.f32.mrf.mxu0
        %v342 = vadd.f32 0.0, %v341
        %343 = vmatmul.f32.gmra.mxu0 %v280
        %v344 = vpop.f32.mrf.mxu0
        %v345 = vadd.f32 0.0, %v344
        %346 = vmatmul.f32.gmra.mxu0 %v283
        %v347 = vpop.f32.mrf.mxu0
        %v348 = vadd.f32 0.0, %v347
        %349 = vmatmul.f32.gmra.mxu0 %v286
        %v350 = vpop.f32.mrf.mxu0
        %v351 = vadd.f32 0.0, %v350
        %352 = vmatmul.f32.gmra.mxu0 %v289
        %v353 = vpop.f32.mrf.mxu0
        %v354 = vadd.f32 0.0, %v353
        %355 = vmatmul.f32.gmra.mxu0 %v292
        %v356 = vpop.f32.mrf.mxu0
        %v357 = vadd.f32 0.0, %v356
        %358 = vmatmul.f32.gmra.mxu0 %v295
        %v359 = vpop.f32.mrf.mxu0
        %v360 = vadd.f32 0.0, %v359
        %361 = vmatmul.f32.gmra.mxu0 %v298
        %v362 = vpop.f32.mrf.mxu0
        %v363 = vadd.f32 0.0, %v362
        %364 = vmatmul.f32.gmra.mxu0 %v301
        %v365 = vpop.f32.mrf.mxu0
        %v366 = vadd.f32 0.0, %v365
        %367 = vmatmul.f32.gmra.mxu0 %v304
        %v368 = vpop.f32.mrf.mxu0
        %v369 = vadd.f32 0.0, %v368
        %370 = vmatmul.f32.gmra.mxu0 %v307
        %v371 = vpop.f32.mrf.mxu0
        %v372 = vadd.f32 0.0, %v371
        %373 = vmatmul.f32.gmra.mxu0 %v310
        %v374 = vpop.f32.mrf.mxu0
        %v375 = vadd.f32 0.0, %v374
        %376 = vdwg.mxu0
        %v377 = vld [vmem:[%s3] sm:$0x1]
        %v379 = vsel %vm263, %v377, 0
        %v382 = vsel %vm263, %v330, 0
        %v385 = vsel %vm263, %v333, 0
        %v388 = vsel %vm263, %v336, 0
        %v391 = vsel %vm263, %v339, 0
        %v394 = vsel %vm263, %v342, 0
        %v397 = vsel %vm263, %v345, 0
        %v400 = vsel %vm263, %v348, 0
        %v403 = vsel %vm263, %v351, 0
        %v406 = vsel %vm263, %v354, 0
        %v409 = vsel %vm263, %v357, 0
        %v412 = vsel %vm263, %v360, 0
        %v415 = vsel %vm263, %v363, 0
        %v418 = vsel %vm263, %v366, 0
        %v421 = vsel %vm263, %v369, 0
        %v424 = vsel %vm263, %v372, 0
        %v427 = vsel %vm263, %v375, 0
        %429 = vmatpush.xpose.msra.mxu0 %v427
        %430 = vmatpush.xpose.msra.mxu0 %v424
        %431 = vmatpush.xpose.msra.mxu0 %v421
        %432 = vmatpush.xpose.msra.mxu0 %v418
        %433 = vmatpush.xpose.msra.mxu0 %v415
        %434 = vmatpush.xpose.msra.mxu0 %v412
        %435 = vmatpush.xpose.msra.mxu0 %v409
        %436 = vmatpush.xpose.msra.mxu0 %v406
        %437 = vmatpush.xpose.msra.mxu0 %v403
        %438 = vmatpush.xpose.msra.mxu0 %v400
        %439 = vmatpush.xpose.msra.mxu0 %v397
        %440 = vmatpush.xpose.msra.mxu0 %v394
        %441 = vmatpush.xpose.msra.mxu0 %v391
        %442 = vmatpush.xpose.msra.mxu0 %v388
        %443 = vmatpush.xpose.msra.mxu0 %v385
        %444 = vmatpush.xpose.msra.mxu0 %v382
        %445 = vmatmul.f32.gmra.mxu0 %v379
        %v446 = vpop.f32.mrf.mxu0
        %v447 = vadd.f32 0.0, %v446
        %448 = vdwg.mxu0
        %v449 = vld [vmem:[%s4] sm:$0xff]
        %v450 = vld [vmem:[%s4 + $0x8] sm:$0xff]
        %v451 = vld [vmem:[%s4 + $0x10] sm:$0xff]
        %v452 = vld [vmem:[%s4 + $0x18] sm:$0xff]
        %453 = vmatpush.msra.mxu0 0.0
        %454 = vmatpush.msra.mxu0 0.0
        %455 = vmatpush.msra.mxu0 0.0
        %456 = vmatpush.msra.mxu0 0.0
        %457 = vmatpush.msra.mxu0 0.0
        %458 = vmatpush.msra.mxu0 0.0
        %459 = vmatpush.msra.mxu0 0.0
        %460 = vmatpush.msra.mxu0 0.0
        %461 = vmatpush.msra.mxu0 0.0
        %462 = vmatpush.msra.mxu0 0.0
        %463 = vmatpush.msra.mxu0 0.0
        %464 = vmatpush.msra.mxu0 0.0
        %465 = vmatpush.msra.mxu0 %v452
        %466 = vmatpush.msra.mxu0 %v451
        %467 = vmatpush.msra.mxu0 %v450
        %468 = vmatpush.msra.mxu0 %v449
        %469 = vmatmul.f32.gmra.mxu0 %v382
        %v470 = vpop.f32.mrf.mxu0
        %v471 = vadd.f32 0.0, %v470
        %472 = vmatmul.f32.gmra.mxu0 %v385
        %v473 = vpop.f32.mrf.mxu0
        %v474 = vadd.f32 0.0, %v473
        %475 = vmatmul.f32.gmra.mxu0 %v388
        %v476 = vpop.f32.mrf.mxu0
        %v477 = vadd.f32 0.0, %v476
        %478 = vmatmul.f32.gmra.mxu0 %v391
        %v479 = vpop.f32.mrf.mxu0
        %v480 = vadd.f32 0.0, %v479
        %481 = vmatmul.f32.gmra.mxu0 %v394
        %v482 = vpop.f32.mrf.mxu0
        %v483 = vadd.f32 0.0, %v482
        %484 = vmatmul.f32.gmra.mxu0 %v397
        %v485 = vpop.f32.mrf.mxu0
        %v486 = vadd.f32 0.0, %v485
        %487 = vmatmul.f32.gmra.mxu0 %v400
        %v488 = vpop.f32.mrf.mxu0
        %v489 = vadd.f32 0.0, %v488
        %490 = vmatmul.f32.gmra.mxu0 %v403
        %v491 = vpop.f32.mrf.mxu0
        %v492 = vadd.f32 0.0, %v491
        %493 = vmatmul.f32.gmra.mxu0 %v406
        %v494 = vpop.f32.mrf.mxu0
        %v495 = vadd.f32 0.0, %v494
        %496 = vmatmul.f32.gmra.mxu0 %v409
        %v497 = vpop.f32.mrf.mxu0
        %v498 = vadd.f32 0.0, %v497
        %499 = vmatmul.f32.gmra.mxu0 %v412
        %v500 = vpop.f32.mrf.mxu0
        %v501 = vadd.f32 0.0, %v500
        %502 = vmatmul.f32.gmra.mxu0 %v415
        %v503 = vpop.f32.mrf.mxu0
        %v504 = vadd.f32 0.0, %v503
        %505 = vmatmul.f32.gmra.mxu0 %v418
        %v506 = vpop.f32.mrf.mxu0
        %v507 = vadd.f32 0.0, %v506
        %508 = vmatmul.f32.gmra.mxu0 %v421
        %v509 = vpop.f32.mrf.mxu0
        %v510 = vadd.f32 0.0, %v509
        %511 = vmatmul.f32.gmra.mxu0 %v424
        %v512 = vpop.f32.mrf.mxu0
        %v513 = vadd.f32 0.0, %v512
        %514 = vmatmul.f32.gmra.mxu0 %v427
        %v515 = vpop.f32.mrf.mxu0
        %v516 = vadd.f32 0.0, %v515
        %517 = vdwg.mxu0
        %v518 = vperm.slane %v447, 0
        %520 = vset.pattern.permute.xlu0 0
        %521 = vperm.xlu0 %520, %v471
        %v522 = vpop.permute.xlu0 %521
        %525 = vset.pattern.permute.xlu0 0
        %526 = vperm.xlu0 %525, %v474
        %v527 = vpop.permute.xlu0 %526
        %530 = vset.pattern.permute.xlu0 0
        %531 = vperm.xlu0 %530, %v477
        %v532 = vpop.permute.xlu0 %531
        %535 = vset.pattern.permute.xlu0 0
        %536 = vperm.xlu0 %535, %v480
        %v537 = vpop.permute.xlu0 %536
        %540 = vset.pattern.permute.xlu0 0
        %541 = vperm.xlu0 %540, %v483
        %v542 = vpop.permute.xlu0 %541
        %545 = vset.pattern.permute.xlu0 0
        %546 = vperm.xlu0 %545, %v486
        %v547 = vpop.permute.xlu0 %546
        %550 = vset.pattern.permute.xlu0 0
        %551 = vperm.xlu0 %550, %v489
        %v552 = vpop.permute.xlu0 %551
        %555 = vset.pattern.permute.xlu0 0
        %556 = vperm.xlu0 %555, %v492
        %v557 = vpop.permute.xlu0 %556
        %560 = vset.pattern.permute.xlu0 0
        %561 = vperm.xlu0 %560, %v495
        %v562 = vpop.permute.xlu0 %561
        %565 = vset.pattern.permute.xlu0 0
        %566 = vperm.xlu0 %565, %v498
        %v567 = vpop.permute.xlu0 %566
        %570 = vset.pattern.permute.xlu0 0
        %571 = vperm.xlu0 %570, %v501
        %v572 = vpop.permute.xlu0 %571
        %575 = vset.pattern.permute.xlu0 0
        %576 = vperm.xlu0 %575, %v504
        %v577 = vpop.permute.xlu0 %576
        %580 = vset.pattern.permute.xlu0 0
        %581 = vperm.xlu0 %580, %v507
        %v582 = vpop.permute.xlu0 %581
        %585 = vset.pattern.permute.xlu0 0
        %586 = vperm.xlu0 %585, %v510
        %v587 = vpop.permute.xlu0 %586
        %590 = vset.pattern.permute.xlu0 0
        %591 = vperm.xlu0 %590, %v513
        %v592 = vpop.permute.xlu0 %591
        %595 = vset.pattern.permute.xlu0 0
        %596 = vperm.xlu0 %595, %v516
        %v597 = vpop.permute.xlu0 %596
        %v599 = vadd.f32 %v518, %v522
        %v600 = vadd.f32 %v518, %v527
        %v601 = vadd.f32 %v518, %v532
        %v602 = vadd.f32 %v518, %v537
        %v603 = vadd.f32 %v518, %v542
        %v604 = vadd.f32 %v518, %v547
        %v605 = vadd.f32 %v518, %v552
        %v606 = vadd.f32 %v518, %v557
        %v607 = vadd.f32 %v518, %v562
        %v608 = vadd.f32 %v518, %v567
        %v609 = vadd.f32 %v518, %v572
        %v610 = vadd.f32 %v518, %v577
        %v611 = vadd.f32 %v518, %v582
        %v612 = vadd.f32 %v518, %v587
        %v613 = vadd.f32 %v518, %v592
        %v614 = vadd.f32 %v518, %v597
        %vm615 = vcmp.gt.f32.partialorder %v599, 0.0
        %vm616 = vcmp.gt.f32.partialorder %v600, 0.0
        %vm617 = vcmp.gt.f32.partialorder %v601, 0.0
        %vm618 = vcmp.gt.f32.partialorder %v602, 0.0
        %vm619 = vcmp.gt.f32.partialorder %v603, 0.0
        %vm620 = vcmp.gt.f32.partialorder %v604, 0.0
        %vm621 = vcmp.gt.f32.partialorder %v605, 0.0
        %vm622 = vcmp.gt.f32.partialorder %v606, 0.0
        %vm623 = vcmp.gt.f32.partialorder %v607, 0.0
        %vm624 = vcmp.gt.f32.partialorder %v608, 0.0
        %vm625 = vcmp.gt.f32.partialorder %v609, 0.0
        %vm626 = vcmp.gt.f32.partialorder %v610, 0.0
        %vm627 = vcmp.gt.f32.partialorder %v611, 0.0
        %vm628 = vcmp.gt.f32.partialorder %v612, 0.0
        %vm629 = vcmp.gt.f32.partialorder %v613, 0.0
        %vm630 = vcmp.gt.f32.partialorder %v614, 0.0
        %v631 = vmul.f32 %v599, 0.2
        %v632 = vmul.f32 %v600, 0.2
        %v633 = vmul.f32 %v601, 0.2
        %v634 = vmul.f32 %v602, 0.2
        %v635 = vmul.f32 %v603, 0.2
        %v636 = vmul.f32 %v604, 0.2
        %v637 = vmul.f32 %v605, 0.2
        %v638 = vmul.f32 %v606, 0.2
        %v639 = vmul.f32 %v607, 0.2
        %v640 = vmul.f32 %v608, 0.2
        %v641 = vmul.f32 %v609, 0.2
        %v642 = vmul.f32 %v610, 0.2
        %v643 = vmul.f32 %v611, 0.2
        %v644 = vmul.f32 %v612, 0.2
        %v645 = vmul.f32 %v613, 0.2
        %v646 = vmul.f32 %v614, 0.2
        %v647 = vsel %vm615, %v599, %v631
        %v648 = vsel %vm616, %v600, %v632
        %v649 = vsel %vm617, %v601, %v633
        %v650 = vsel %vm618, %v602, %v634
        %v651 = vsel %vm619, %v603, %v635
        %v652 = vsel %vm620, %v604, %v636
        %v653 = vsel %vm621, %v605, %v637
        %v654 = vsel %vm622, %v606, %v638
        %v655 = vsel %vm623, %v607, %v639
        %v656 = vsel %vm624, %v608, %v640
        %v657 = vsel %vm625, %v609, %v641
        %v658 = vsel %vm626, %v610, %v642
        %v659 = vsel %vm627, %v611, %v643
        %v660 = vsel %vm628, %v612, %v644
        %v661 = vsel %vm629, %v613, %v645
        %v662 = vsel %vm630, %v614, %v646
        %v663 = vld [vmem:[%s242] sm:$0xff]
        %v664 = vld [vmem:[%s242 + $0x8] sm:$0xff]
        %v665 = vld [vmem:[%s242 + $0x10] sm:$0xff]
        %v666 = vld [vmem:[%s242 + $0x18] sm:$0xff]
        %v667 = vunpack.c.0.s8 %v663
        %v668 = vunpack.c.1.s8 %v663
        %v669 = vunpack.c.2.s8 %v663
        %v670 = vunpack.c.3.s8 %v663
        %v671 = vunpack.c.0.s8 %v664
        %v672 = vunpack.c.1.s8 %v664
        %v673 = vunpack.c.2.s8 %v664
        %v674 = vunpack.c.3.s8 %v664
        %v675 = vunpack.c.0.s8 %v665
        %v676 = vunpack.c.1.s8 %v665
        %v677 = vunpack.c.2.s8 %v665
        %v678 = vunpack.c.3.s8 %v665
        %v679 = vunpack.c.0.s8 %v666
        %v680 = vunpack.c.1.s8 %v666
        %v681 = vunpack.c.2.s8 %v666
        %v682 = vunpack.c.3.s8 %v666
        %v683 = vcvt.s32.f32 %v667
        %v684 = vcvt.s32.f32 %v668
        %v685 = vcvt.s32.f32 %v669
        %v686 = vcvt.s32.f32 %v670
        %v687 = vcvt.s32.f32 %v671
        %v688 = vcvt.s32.f32 %v672
        %v689 = vcvt.s32.f32 %v673
        %v690 = vcvt.s32.f32 %v674
        %v691 = vcvt.s32.f32 %v675
        %v692 = vcvt.s32.f32 %v676
        %v693 = vcvt.s32.f32 %v677
        %v694 = vcvt.s32.f32 %v678
        %v695 = vcvt.s32.f32 %v679
        %v696 = vcvt.s32.f32 %v680
        %v697 = vcvt.s32.f32 %v681
        %v698 = vcvt.s32.f32 %v682
        %vm699 = vcmp.gt.f32.partialorder %v683, 0.0
        %vm700 = vcmp.gt.f32.partialorder %v684, 0.0
        %vm701 = vcmp.gt.f32.partialorder %v685, 0.0
        %vm702 = vcmp.gt.f32.partialorder %v686, 0.0
        %vm703 = vcmp.gt.f32.partialorder %v687, 0.0
        %vm704 = vcmp.gt.f32.partialorder %v688, 0.0
        %vm705 = vcmp.gt.f32.partialorder %v689, 0.0
        %vm706 = vcmp.gt.f32.partialorder %v690, 0.0
        %vm707 = vcmp.gt.f32.partialorder %v691, 0.0
        %vm708 = vcmp.gt.f32.partialorder %v692, 0.0
        %vm709 = vcmp.gt.f32.partialorder %v693, 0.0
        %vm710 = vcmp.gt.f32.partialorder %v694, 0.0
        %vm711 = vcmp.gt.f32.partialorder %v695, 0.0
        %vm712 = vcmp.gt.f32.partialorder %v696, 0.0
        %vm713 = vcmp.gt.f32.partialorder %v697, 0.0
        %vm714 = vcmp.gt.f32.partialorder %v698, 0.0
        %v715 = vsel %vm699, %v647, -9e+15
        %v716 = vsel %vm700, %v648, -9e+15
        %v717 = vsel %vm701, %v649, -9e+15
        %v718 = vsel %vm702, %v650, -9e+15
        %v719 = vsel %vm703, %v651, -9e+15
        %v720 = vsel %vm704, %v652, -9e+15
        %v721 = vsel %vm705, %v653, -9e+15
        %v722 = vsel %vm706, %v654, -9e+15
        %v723 = vsel %vm707, %v655, -9e+15
        %v724 = vsel %vm708, %v656, -9e+15
        %v725 = vsel %vm709, %v657, -9e+15
        %v726 = vsel %vm710, %v658, -9e+15
        %v727 = vsel %vm711, %v659, -9e+15
        %v728 = vsel %vm712, %v660, -9e+15
        %v729 = vsel %vm713, %v661, -9e+15
        %v730 = vsel %vm714, %v662, -9e+15
        %731 = vmax.xlane.f32.xlu0 %v715
        %v732 = vpop.xlane.xlu0 %731
        %733 = vmax.xlane.f32.xlu0 %v716
        %v734 = vpop.xlane.xlu0 %733
        %735 = vmax.xlane.f32.xlu0 %v717
        %v736 = vpop.xlane.xlu0 %735
        %737 = vmax.xlane.f32.xlu0 %v718
        %v738 = vpop.xlane.xlu0 %737
        %739 = vmax.xlane.f32.xlu0 %v719
        %v740 = vpop.xlane.xlu0 %739
        %741 = vmax.xlane.f32.xlu0 %v720
        %v742 = vpop.xlane.xlu0 %741
        %743 = vmax.xlane.f32.xlu0 %v721
        %v744 = vpop.xlane.xlu0 %743
        %745 = vmax.xlane.f32.xlu0 %v722
        %v746 = vpop.xlane.xlu0 %745
        %747 = vmax.xlane.f32.xlu0 %v723
        %v748 = vpop.xlane.xlu0 %747
        %749 = vmax.xlane.f32.xlu0 %v724
        %v750 = vpop.xlane.xlu0 %749
        %751 = vmax.xlane.f32.xlu0 %v725
        %v752 = vpop.xlane.xlu0 %751
        %753 = vmax.xlane.f32.xlu0 %v726
        %v754 = vpop.xlane.xlu0 %753
        %755 = vmax.xlane.f32.xlu0 %v727
        %v756 = vpop.xlane.xlu0 %755
        %757 = vmax.xlane.f32.xlu0 %v728
        %v758 = vpop.xlane.xlu0 %757
        %759 = vmax.xlane.f32.xlu0 %v729
        %v760 = vpop.xlane.xlu0 %759
        %761 = vmax.xlane.f32.xlu0 %v730
        %v762 = vpop.xlane.xlu0 %761
        %v763 = vsub.f32 %v715, %v732
        %v764 = vsub.f32 %v716, %v734
        %v765 = vsub.f32 %v717, %v736
        %v766 = vsub.f32 %v718, %v738
        %v767 = vsub.f32 %v719, %v740
        %v768 = vsub.f32 %v720, %v742
        %v769 = vsub.f32 %v721, %v744
        %v770 = vsub.f32 %v722, %v746
        %v771 = vsub.f32 %v723, %v748
        %v772 = vsub.f32 %v724, %v750
        %v773 = vsub.f32 %v725, %v752
        %v774 = vsub.f32 %v726, %v754
        %v775 = vsub.f32 %v727, %v756
        %v776 = vsub.f32 %v728, %v758
        %v777 = vsub.f32 %v729, %v760
        %v778 = vsub.f32 %v730, %v762
        %v779 = vmul.f32 %v763, 1.442695
        %v780 = vpow.pop %v779
        %v781 = vmul.f32 %v764, 1.442695
        %v782 = vpow.pop %v781
        %v783 = vmul.f32 %v765, 1.442695
        %v784 = vpow.pop %v783
        %v785 = vmul.f32 %v766, 1.442695
        %v786 = vpow.pop %v785
        %v787 = vmul.f32 %v767, 1.442695
        %v788 = vpow.pop %v787
        %v789 = vmul.f32 %v768, 1.442695
        %v790 = vpow.pop %v789
        %v791 = vmul.f32 %v769, 1.442695
        %v792 = vpow.pop %v791
        %v793 = vmul.f32 %v770, 1.442695
        %v794 = vpow.pop %v793
        %v795 = vmul.f32 %v771, 1.442695
        %v796 = vpow.pop %v795
        %v797 = vmul.f32 %v772, 1.442695
        %v798 = vpow.pop %v797
        %v799 = vmul.f32 %v773, 1.442695
        %v800 = vpow.pop %v799
        %v801 = vmul.f32 %v774, 1.442695
        %v802 = vpow.pop %v801
        %v803 = vmul.f32 %v775, 1.442695
        %v804 = vpow.pop %v803
        %v805 = vmul.f32 %v776, 1.442695
        %v806 = vpow.pop %v805
        %v807 = vmul.f32 %v777, 1.442695
        %v808 = vpow.pop %v807
        %v809 = vmul.f32 %v778, 1.442695
        %v810 = vpow.pop %v809
        %811 = vadd.xlane.f32.xlu0 %v780
        %v812 = vpop.xlane.xlu0 %811
        %813 = vadd.xlane.f32.xlu0 %v782
        %v814 = vpop.xlane.xlu0 %813
        %815 = vadd.xlane.f32.xlu0 %v784
        %v816 = vpop.xlane.xlu0 %815
        %817 = vadd.xlane.f32.xlu0 %v786
        %v818 = vpop.xlane.xlu0 %817
        %819 = vadd.xlane.f32.xlu0 %v788
        %v820 = vpop.xlane.xlu0 %819
        %821 = vadd.xlane.f32.xlu0 %v790
        %v822 = vpop.xlane.xlu0 %821
        %823 = vadd.xlane.f32.xlu0 %v792
        %v824 = vpop.xlane.xlu0 %823
        %825 = vadd.xlane.f32.xlu0 %v794
        %v826 = vpop.xlane.xlu0 %825
        %827 = vadd.xlane.f32.xlu0 %v796
        %v828 = vpop.xlane.xlu0 %827
        %829 = vadd.xlane.f32.xlu0 %v798
        %v830 = vpop.xlane.xlu0 %829
        %831 = vadd.xlane.f32.xlu0 %v800
        %v832 = vpop.xlane.xlu0 %831
        %833 = vadd.xlane.f32.xlu0 %v802
        %v834 = vpop.xlane.xlu0 %833
        %835 = vadd.xlane.f32.xlu0 %v804
        %v836 = vpop.xlane.xlu0 %835
        %837 = vadd.xlane.f32.xlu0 %v806
        %v838 = vpop.xlane.xlu0 %837
        %839 = vadd.xlane.f32.xlu0 %v808
        %v840 = vpop.xlane.xlu0 %839
        %841 = vadd.xlane.f32.xlu0 %v810
        %v842 = vpop.xlane.xlu0 %841
        %v843 = vrcp.pop %v812
        %v844 = vrcp.pop %v814
        %v845 = vrcp.pop %v816
        %v846 = vrcp.pop %v818
        %v847 = vrcp.pop %v820
        %v848 = vrcp.pop %v822
        %v849 = vrcp.pop %v824
        %v850 = vrcp.pop %v826
        %v851 = vrcp.pop %v828
        %v852 = vrcp.pop %v830
        %v853 = vrcp.pop %v832
        %v854 = vrcp.pop %v834
        %v855 = vrcp.pop %v836
        %v856 = vrcp.pop %v838
        %v857 = vrcp.pop %v840
        %v858 = vrcp.pop %v842
        %v859 = vmul.f32 %v780, %v843
        %v860 = vmul.f32 %v782, %v844
        %v861 = vmul.f32 %v784, %v845
        %v862 = vmul.f32 %v786, %v846
        %v863 = vmul.f32 %v788, %v847
        %v864 = vmul.f32 %v790, %v848
        %v865 = vmul.f32 %v792, %v849
        %v866 = vmul.f32 %v794, %v850
        %v867 = vmul.f32 %v796, %v851
        %v868 = vmul.f32 %v798, %v852
        %v869 = vmul.f32 %v800, %v853
        %v870 = vmul.f32 %v802, %v854
        %v871 = vmul.f32 %v804, %v855
        %v872 = vmul.f32 %v806, %v856
        %v873 = vmul.f32 %v808, %v857
        %v874 = vmul.f32 %v810, %v858
        %875 = vmatpush.msra.mxu0 %v375
        %876 = vmatpush.msra.mxu0 %v372
        %877 = vmatpush.msra.mxu0 %v369
        %878 = vmatpush.msra.mxu0 %v366
        %879 = vmatpush.msra.mxu0 %v363
        %880 = vmatpush.msra.mxu0 %v360
        %881 = vmatpush.msra.mxu0 %v357
        %882 = vmatpush.msra.mxu0 %v354
        %883 = vmatpush.msra.mxu0 %v351
        %884 = vmatpush.msra.mxu0 %v348
        %885 = vmatpush.msra.mxu0 %v345
        %886 = vmatpush.msra.mxu0 %v342
        %887 = vmatpush.msra.mxu0 %v339
        %888 = vmatpush.msra.mxu0 %v336
        %889 = vmatpush.msra.mxu0 %v333
        %890 = vmatpush.msra.mxu0 %v330
        %891 = vmatmul.f32.gmra.mxu0 %v859
        %v892 = vpop.f32.mrf.mxu0
        %v893 = vadd.f32 0.0, %v892
        %894 = vmatmul.f32.gmra.mxu0 %v860
        %v895 = vpop.f32.mrf.mxu0
        %v896 = vadd.f32 0.0, %v895
        %897 = vmatmul.f32.gmra.mxu0 %v861
        %v898 = vpop.f32.mrf.mxu0
        %v899 = vadd.f32 0.0, %v898
        %900 = vmatmul.f32.gmra.mxu0 %v862
        %v901 = vpop.f32.mrf.mxu0
        %v902 = vadd.f32 0.0, %v901
        %903 = vmatmul.f32.gmra.mxu0 %v863
        %v904 = vpop.f32.mrf.mxu0
        %v905 = vadd.f32 0.0, %v904
        %906 = vmatmul.f32.gmra.mxu0 %v864
        %v907 = vpop.f32.mrf.mxu0
        %v908 = vadd.f32 0.0, %v907
        %909 = vmatmul.f32.gmra.mxu0 %v865
        %v910 = vpop.f32.mrf.mxu0
        %v911 = vadd.f32 0.0, %v910
        %912 = vmatmul.f32.gmra.mxu0 %v866
        %v913 = vpop.f32.mrf.mxu0
        %v914 = vadd.f32 0.0, %v913
        %915 = vmatmul.f32.gmra.mxu0 %v867
        %v916 = vpop.f32.mrf.mxu0
        %v917 = vadd.f32 0.0, %v916
        %918 = vmatmul.f32.gmra.mxu0 %v868
        %v919 = vpop.f32.mrf.mxu0
        %v920 = vadd.f32 0.0, %v919
        %921 = vmatmul.f32.gmra.mxu0 %v869
        %v922 = vpop.f32.mrf.mxu0
        %v923 = vadd.f32 0.0, %v922
        %924 = vmatmul.f32.gmra.mxu0 %v870
        %v925 = vpop.f32.mrf.mxu0
        %v926 = vadd.f32 0.0, %v925
        %927 = vmatmul.f32.gmra.mxu0 %v871
        %v928 = vpop.f32.mrf.mxu0
        %v929 = vadd.f32 0.0, %v928
        %930 = vmatmul.f32.gmra.mxu0 %v872
        %v931 = vpop.f32.mrf.mxu0
        %v932 = vadd.f32 0.0, %v931
        %933 = vmatmul.f32.gmra.mxu0 %v873
        %v934 = vpop.f32.mrf.mxu0
        %v935 = vadd.f32 0.0, %v934
        %936 = vmatmul.f32.gmra.mxu0 %v874
        %v937 = vpop.f32.mrf.mxu0
        %v938 = vadd.f32 0.0, %v937
        %939 = vdwg.mxu0
        %vm940 = vcmp.gt.f32.partialorder %v893, 0.0
        %vm941 = vcmp.gt.f32.partialorder %v896, 0.0
        %vm942 = vcmp.gt.f32.partialorder %v899, 0.0
        %vm943 = vcmp.gt.f32.partialorder %v902, 0.0
        %vm944 = vcmp.gt.f32.partialorder %v905, 0.0
        %vm945 = vcmp.gt.f32.partialorder %v908, 0.0
        %vm946 = vcmp.gt.f32.partialorder %v911, 0.0
        %vm947 = vcmp.gt.f32.partialorder %v914, 0.0
        %vm948 = vcmp.gt.f32.partialorder %v917, 0.0
        %vm949 = vcmp.gt.f32.partialorder %v920, 0.0
        %vm950 = vcmp.gt.f32.partialorder %v923, 0.0
        %vm951 = vcmp.gt.f32.partialorder %v926, 0.0
        %vm952 = vcmp.gt.f32.partialorder %v929, 0.0
        %vm953 = vcmp.gt.f32.partialorder %v932, 0.0
        %vm954 = vcmp.gt.f32.partialorder %v935, 0.0
        %vm955 = vcmp.gt.f32.partialorder %v938, 0.0
        %v956 = vmin.f32 %v893, 0.0
        %v957 = vmin.f32 %v896, 0.0
        %v958 = vmin.f32 %v899, 0.0
        %v959 = vmin.f32 %v902, 0.0
        %v960 = vmin.f32 %v905, 0.0
        %v961 = vmin.f32 %v908, 0.0
        %v962 = vmin.f32 %v911, 0.0
        %v963 = vmin.f32 %v914, 0.0
        %v964 = vmin.f32 %v917, 0.0
        %v965 = vmin.f32 %v920, 0.0
        %v966 = vmin.f32 %v923, 0.0
        %v967 = vmin.f32 %v926, 0.0
        %v968 = vmin.f32 %v929, 0.0
        %v969 = vmin.f32 %v932, 0.0
        %v970 = vmin.f32 %v935, 0.0
        %v971 = vmin.f32 %v938, 0.0
        %v972 = vmul.f32 %v956, 1.442695
        %v973 = vpow.pop %v972
        %v974 = vmul.f32 %v957, 1.442695
        %v975 = vpow.pop %v974
        %v976 = vmul.f32 %v958, 1.442695
        %v977 = vpow.pop %v976
        %v978 = vmul.f32 %v959, 1.442695
        %v979 = vpow.pop %v978
        %v980 = vmul.f32 %v960, 1.442695
        %v981 = vpow.pop %v980
        %v982 = vmul.f32 %v961, 1.442695
        %v983 = vpow.pop %v982
        %v984 = vmul.f32 %v962, 1.442695
        %v985 = vpow.pop %v984
        %v986 = vmul.f32 %v963, 1.442695
        %v987 = vpow.pop %v986
        %v988 = vmul.f32 %v964, 1.442695
        %v989 = vpow.pop %v988
        %v990 = vmul.f32 %v965, 1.442695
        %v991 = vpow.pop %v990
        %v992 = vmul.f32 %v966, 1.442695
        %v993 = vpow.pop %v992
        %v994 = vmul.f32 %v967, 1.442695
        %v995 = vpow.pop %v994
        %v996 = vmul.f32 %v968, 1.442695
        %v997 = vpow.pop %v996
        %v998 = vmul.f32 %v969, 1.442695
        %v999 = vpow.pop %v998
        %v1000 = vmul.f32 %v970, 1.442695
        %v1001 = vpow.pop %v1000
        %v1002 = vmul.f32 %v971, 1.442695
        %v1003 = vpow.pop %v1002
        %v1004 = vsub.f32 %v973, 1.0
        %v1005 = vsub.f32 %v975, 1.0
        %v1006 = vsub.f32 %v977, 1.0
        %v1007 = vsub.f32 %v979, 1.0
        %v1008 = vsub.f32 %v981, 1.0
        %v1009 = vsub.f32 %v983, 1.0
        %v1010 = vsub.f32 %v985, 1.0
        %v1011 = vsub.f32 %v987, 1.0
        %v1012 = vsub.f32 %v989, 1.0
        %v1013 = vsub.f32 %v991, 1.0
        %v1014 = vsub.f32 %v993, 1.0
        %v1015 = vsub.f32 %v995, 1.0
        %v1016 = vsub.f32 %v997, 1.0
        %v1017 = vsub.f32 %v999, 1.0
        %v1018 = vsub.f32 %v1001, 1.0
        %v1019 = vsub.f32 %v1003, 1.0
        %v1020 = vsel %vm940, %v893, %v1004
        %v1021 = vsel %vm941, %v896, %v1005
        %v1022 = vsel %vm942, %v899, %v1006
        %v1023 = vsel %vm943, %v902, %v1007
        %v1024 = vsel %vm944, %v905, %v1008
        %v1025 = vsel %vm945, %v908, %v1009
        %v1026 = vsel %vm946, %v911, %v1010
        %v1027 = vsel %vm947, %v914, %v1011
        %v1028 = vsel %vm948, %v917, %v1012
        %v1029 = vsel %vm949, %v920, %v1013
        %v1030 = vsel %vm950, %v923, %v1014
        %v1031 = vsel %vm951, %v926, %v1015
        %v1032 = vsel %vm952, %v929, %v1016
        %v1033 = vsel %vm953, %v932, %v1017
        %v1034 = vsel %vm954, %v935, %v1018
        %v1035 = vsel %vm955, %v938, %v1019
        %1036 = vxpose.xlu0.b32.start [1/16] %v1020, 128
        %1037 = vxpose.xlu0.b32.cont [2/16] %v1021, 128
        %1038 = vxpose.xlu0.b32.cont [3/16] %v1022, 128
        %1039 = vxpose.xlu0.b32.cont [4/16] %v1023, 128
        %1040 = vxpose.xlu0.b32.cont [5/16] %v1024, 128
        %1041 = vxpose.xlu0.b32.cont [6/16] %v1025, 128
        %1042 = vxpose.xlu0.b32.cont [7/16] %v1026, 128
        %1043 = vxpose.xlu0.b32.cont [8/16] %v1027, 128
        %1044 = vxpose.xlu0.b32.cont [9/16] %v1028, 128
        %1045 = vxpose.xlu0.b32.cont [10/16] %v1029, 128
        %1046 = vxpose.xlu0.b32.cont [11/16] %v1030, 128
        %1047 = vxpose.xlu0.b32.cont [12/16] %v1031, 128
        %1048 = vxpose.xlu0.b32.cont [13/16] %v1032, 128
        %1049 = vxpose.xlu0.b32.cont [14/16] %v1033, 128
        %1050 = vxpose.xlu0.b32.cont [15/16] %v1034, 128
        %1051 = vxpose.xlu0.b32.end [16/16] %v1035, 128
        %v1052 = vpop.trf.xlu0
        %v1053 = vpop.trf.xlu0
        %v1054 = vpop.trf.xlu0
        %v1055 = vpop.trf.xlu0
        %v1056 = vpop.trf.xlu0
        %v1057 = vpop.trf.xlu0
        %v1058 = vpop.trf.xlu0
        %v1059 = vpop.trf.xlu0
        %v1060 = vpop.trf.xlu0
        %v1061 = vpop.trf.xlu0
        %v1062 = vpop.trf.xlu0
        %v1063 = vpop.trf.xlu0
        %v1064 = vpop.trf.xlu0
        %v1065 = vpop.trf.xlu0
        %v1066 = vpop.trf.xlu0
        %v1067 = vpop.trf.xlu0
        %1068 = vst [vmem:[%s232] sm:$0xff] %v1052
        %1069 = vst [vmem:[%s232 + $0x8] sm:$0xff] %v1053
        %1070 = vst [vmem:[%s232 + $0x10] sm:$0xff] %v1054
        %1071 = vst [vmem:[%s232 + $0x18] sm:$0xff] %v1055
        %s1072 = sand.u32 %s142, 1
        %s1073 = scalar_lea.sflag [#allocation3], %s1072
        %s1074 = sand.u32 %s142, 1
        %s1075 = smul.addr %s1074, 32
        %s1076 = scalar_lea.vmem [#allocation2], %s1075
        // Predicated region
        $region41: #{tpu_custom_call.1} parent=39 // pred_check
          %p1077 = pneg %p152
        $region42: #{tpu_custom_call.1} parent=39 // pred_check_branch
          %1079 = sbr.rel (%p1077) target = $region44
        $region43: #{tpu_custom_call.1} parent=39 // pred_region
          %1081 = vsyncadd %s1073, 0
          %s1082 = smul.addr %s19, 4
          %s1083 = smul.addr %s1082, 8
          %s1084 = scalar_lea.hbm %s5, %s1083
          %s1085 = sshll.u32 %s1076, 4
          %s1086 = int_to_ptr.vmem [resolvable:$true] %s1085
          %s1087 = sshll.u32 %s1084, 4
          %s1088 = int_to_ptr.hbm [resolvable:$true] %s1087
          %1093 = dma.vmem_to_hbm [thread:$0]  %s1086, 512, %s1088, %s1073, 128, 128, 8
        $region44: #{tpu_custom_call.1} parent=39 // pred_fallthru
          _
      $region40: #{tpu_custom_call.1} parent=5 // pred_fallthru
        _
      %p1094 = scmp.le.s32.totalorder 2, %s14
      // Predicated region
      $region45: #{tpu_custom_call.1} parent=5 // pred_check
        %p1095 = pneg %p1094
      $region46: #{tpu_custom_call.1} parent=5 // pred_check_branch
        %1097 = sbr.rel (%p1095) target = $region48
      $region47: #{tpu_custom_call.1} parent=5 // pred_region
        %s1098 = ssub.s32 %s14, 2
        // Predicated region
        $region49: #{tpu_custom_call.1} parent=47 // pred_check
          %p1099 = pneg %p158
        $region50: #{tpu_custom_call.1} parent=47 // pred_check_branch
          %1101 = sbr.rel (%p1099) target = $region52
        $region51: #{tpu_custom_call.1} parent=47 // pred_region
          %s1102 = sand.u32 %s143, 1
          %s1103 = scalar_lea.sflag [#allocation3], %s1102
          %s1104 = sand.u32 %s143, 1
          %s1105 = smul.addr %s1104, 32
          %s1106 = scalar_lea.vmem [#allocation2], %s1105
          %1108 = dma.done %s1103, 512
        $region52: #{tpu_custom_call.1} parent=47 // pred_fallthru
          _
      $region48: #{tpu_custom_call.1} parent=5 // pred_fallthru
        _
    $region6: #{tpu_custom_call.1} parent=1 // loop_footer
      %s18 = sadd.s32 1, %s14
    $region7: #{tpu_custom_call.1} parent=1 // loop_footer_branch
      %13 = sbr.rel target = $region3
    $region8: #{tpu_custom_call.1} parent=1 // loop_exit
      _
    %1109 = vsyncpa [#allocation3], 1
    %s1110 = scalar_lea.sflag [#allocation3], 1
    %1111 = vsyncpa %s1110, 1

</llo_original>
